<compile_context>
chip_gen: v5e
topology: v5e:2x2
jax: 0.10.0
libtpu: 0.0.40
codegen_flags: <defaults>
</compile_context>

<pallas_src>
import jax
import jax.numpy as jnp
from jax.experimental import pallas as pl
from jax.experimental.pallas import tpu as pltpu

LANE = 128


def _round_up(x, m):
    return ((x + m - 1) // m) * m


def dqn_kernel(x_ref,
               w1_ref, b1_ref,          # feature layer 1   [S, H1], [1, H1]
               w2_ref, b2_ref,          # feature layer 2   [H1, H2], [1, H2]
               wh_ref, bh_ref,          # fused head L1     [H2, 2*H2], [1, 2*H2]
               wq_ref, bq_ref,          # fused head L2 + dueling fold [2*H2, APAD], [1, APAD]
               q_ref):                  # out               [TB, APAD]
    wdt = w1_ref.dtype                  # weight dtype (bf16 by default, or f32)
    x = x_ref[...].astype(wdt)

    # feature MLP
    h = jnp.maximum(
        jnp.dot(x, w1_ref[...], preferred_element_type=jnp.float32) + b1_ref[...], 0.0)
    h = jnp.maximum(
        jnp.dot(h.astype(wdt), w2_ref[...], preferred_element_type=jnp.float32) + b2_ref[...], 0.0)

    # fused advantage|value first layers: one (TB, H2) @ (H2, 2*H2) matmul
    h = jnp.maximum(
        jnp.dot(h.astype(wdt), wh_ref[...], preferred_element_type=jnp.float32) + bh_ref[...], 0.0)

    # fused second layers with the dueling combine folded into the weights:
    #   q = V + A - mean(A)  ==  [a1|v1] @ wq + bq   (exact, by linearity)
    q_ref[...] = (
        jnp.dot(h.astype(wdt), wq_ref[...], preferred_element_type=jnp.float32) + bq_ref[...]
    ).astype(q_ref.dtype)


def prepare_params(p, action_dim, weight_dtype=jnp.bfloat16):
    """Fuse head weights, fold the dueling mean into them, and pad only the
    output (action) axis to 128 lanes.  Weights default to bf16 (MXU-native on
    all generations); biases stay f32."""
    h2 = p["w2"].shape[1]
    apad = _round_up(action_dim, LANE)

    # fuse the two head first layers along the output axis
    wh = jnp.concatenate([p["wa1"], p["wv1"]], axis=1)            # [H2, 2*H2]
    bh = jnp.concatenate([p["ba1"], p["bv1"]], axis=1)            # [1,  2*H2]

    # fold  q = V + A - mean(A)  into the fused second-layer weights (in f32,
    # before any low-precision cast)
    wa2c = p["wa2"] - jnp.mean(p["wa2"], axis=1, keepdims=True)   # [H2, A]
    ba2c = p["ba2"] - jnp.mean(p["ba2"], axis=1, keepdims=True)   # [1, A]
    wq = jnp.zeros((2 * h2, apad), jnp.float32)
    wq = wq.at[:h2, :action_dim].set(wa2c)
    wq = wq.at[h2:, :action_dim].set(jnp.broadcast_to(p["wv2"], (h2, action_dim)))
    bq = jnp.zeros((1, apad), jnp.float32).at[:, :action_dim].set(ba2c + p["bv2"])

    wd = weight_dtype
    return {"w1": p["w1"].astype(wd), "b1": p["b1"],
            "w2": p["w2"].astype(wd), "b2": p["b2"],
            "wh": wh.astype(wd),      "bh": bh,
            "wq": wq.astype(wd),      "bq": bq}


def _pick_batch_tile(batch, *, cap=2048, cores=2):
    """Batch tile: small batches run as one tile; large batches use multiples
    of 256 (128 near the boundary), capped at 2048, and split so the grid has
    >= `cores` steps (keeps both v7x TensorCores busy via "parallel")."""
    if batch < 256:
        return _round_up(max(batch, 8), 8)
    per_core = -(-batch // cores)
    tb = _round_up(per_core, 256) if per_core >= 256 else _round_up(per_core, 128)
    return min(cap, tb)


def dqn_forward(x, fp, action_dim, *, trim_output=True):
    """x: [B, state_dim] f32.  fp: output of prepare_params.
    Returns [B, action_dim] (or the padded [b_pad, 128] block if trim_output=False)."""
    batch, state_dim = x.shape
    h1 = fp["w1"].shape[1]
    h2 = fp["w2"].shape[1]
    apad = fp["wq"].shape[1]

    tb = _pick_batch_tile(batch)
    b_pad = _round_up(batch, tb)
    # Pad the batch axis only when needed (no lane padding of state_dim).
    xk = x if b_pad == batch else jnp.zeros((b_pad, state_dim), x.dtype).at[:batch].set(x)

    # x / q are streamed per batch tile; all weights/biases are full-extent
    # VMEM-resident refs (single-buffered, fetched once).
    act_spec = pl.BlockSpec((tb, state_dim), lambda i: (i, 0))
    out_spec = pl.BlockSpec((tb, apad), lambda i: (i, 0))
    resident = pl.BlockSpec(memory_space=pltpu.MemorySpace.VMEM)
    in_specs = [act_spec] + [resident] * 8

    flops = 2 * b_pad * (state_dim * h1 + h1 * h2 + h2 * 2 * h2 + 2 * h2 * apad)
    wbytes = sum(int(v.size) * v.dtype.itemsize for v in
                 (fp["w1"], fp["b1"], fp["w2"], fp["b2"],
                  fp["wh"], fp["bh"], fp["wq"], fp["bq"]))
    bytes_accessed = int(xk.size) * xk.dtype.itemsize + wbytes + b_pad * apad * 4

    q_pad = pl.pallas_call(
        dqn_kernel,
        out_shape=jax.ShapeDtypeStruct((b_pad, apad), jnp.float32),
        grid=(b_pad // tb,),
        in_specs=in_specs,
        out_specs=out_spec,
        compiler_params=pltpu.CompilerParams(dimension_semantics=("parallel",)),
        cost_estimate=pl.CostEstimate(flops=flops, transcendentals=0,
                                      bytes_accessed=bytes_accessed),
    )(xk, fp["w1"], fp["b1"], fp["w2"], fp["b2"],
      fp["wh"], fp["bh"], fp["wq"], fp["bq"])

    if not trim_output:
        return q_pad
    return q_pad[:batch, :action_dim]


def init_params(key, state_dim, action_dim, hidden1=256, hidden2=256):
    """Deterministic kaiming-normal init (matches nn.init.kaiming_normal_,
    nonlinearity='relu', mode='fan_in'); biases = 0.  Weights stored as [in, out]."""
    def kaiming(k, fan_in, fan_out):
        std = jnp.sqrt(2.0 / fan_in)
        return (std * jax.random.normal(k, (fan_out, fan_in), jnp.float32)).T

    ks = jax.random.split(key, 6)
    return {
        "w1": kaiming(ks[0], state_dim, hidden1), "b1": jnp.zeros((1, hidden1), jnp.float32),
        "w2": kaiming(ks[1], hidden1, hidden2),   "b2": jnp.zeros((1, hidden2), jnp.float32),
        "wa1": kaiming(ks[2], hidden2, hidden2),  "ba1": jnp.zeros((1, hidden2), jnp.float32),
        "wa2": kaiming(ks[3], hidden2, action_dim), "ba2": jnp.zeros((1, action_dim), jnp.float32),
        "wv1": kaiming(ks[4], hidden2, hidden2),  "bv1": jnp.zeros((1, hidden2), jnp.float32),
        "wv2": kaiming(ks[5], hidden2, 1),        "bv2": jnp.zeros((1, 1), jnp.float32),
    }


def reference_forward(x, p):
    """Pure-JAX reference matching the PyTorch module exactly (unfused, f32)."""
    h = jnp.maximum(x @ p["w1"] + p["b1"], 0.0)
    h = jnp.maximum(h @ p["w2"] + p["b2"], 0.0)
    a = jnp.maximum(h @ p["wa1"] + p["ba1"], 0.0) @ p["wa2"] + p["ba2"]
    v = jnp.maximum(h @ p["wv1"] + p["bv1"], 0.0) @ p["wv2"] + p["bv2"]
    return v + a - jnp.mean(a, axis=1, keepdims=True)


if __name__ == "__main__":
    # Small shapes consistent with the module (flat state vector per sample).
    batch, state_dim, action_dim = 8, 16, 4
    hidden1 = hidden2 = 256      # module defaults

    key = jax.random.PRNGKey(0)
    pkey, xkey = jax.random.split(key)
    params = init_params(pkey, state_dim, action_dim, hidden1, hidden2)
    x = jax.random.normal(xkey, (batch, state_dim), jnp.float32)

    q_ref = reference_forward(x, params)

    # f32-weight path: near-exact (only fp reassociation from the dueling fold).
    fused_f32 = prepare_params(params, action_dim, weight_dtype=jnp.float32)
    q32 = jax.block_until_ready(dqn_forward(x, fused_f32, action_dim))
    assert q32.shape == (batch, action_dim)
    assert jnp.allclose(q32, q_ref, atol=1e-4, rtol=1e-4), \
        float(jnp.max(jnp.abs(q32 - q_ref)))

    # Default bf16-weight path (MXU-native on v5e/v6e/v7x); f32 accumulation.
    fused_bf16 = prepare_params(params, action_dim)
    qbf = jax.block_until_ready(dqn_forward(x, fused_bf16, action_dim))
    assert qbf.shape == (batch, action_dim)
    assert jnp.allclose(qbf, q_ref, atol=1e-1, rtol=1e-1), \
        float(jnp.max(jnp.abs(qbf - q_ref)))

    print("KERNEL_OK")
</pallas_src>

<mosaic_0001>
module attributes {stable_mosaic.version = 11 : i64} {
  func.func @dqn_kernel(%arg0: i32, %arg1: memref<8x16xf32, #tpu.memory_space<vmem>>, %arg2: memref<16x256xf32, #tpu.memory_space<vmem>>, %arg3: memref<1x256xf32, #tpu.memory_space<vmem>>, %arg4: memref<256x256xf32, #tpu.memory_space<vmem>>, %arg5: memref<1x256xf32, #tpu.memory_space<vmem>>, %arg6: memref<256x512xf32, #tpu.memory_space<vmem>>, %arg7: memref<1x512xf32, #tpu.memory_space<vmem>>, %arg8: memref<512x128xf32, #tpu.memory_space<vmem>>, %arg9: memref<1x128xf32, #tpu.memory_space<vmem>>, %arg10: memref<8x128xf32, #tpu.memory_space<vmem>>) attributes {dimension_semantics = [#tpu.dimension_semantics<parallel>], iteration_bounds = array<i64: 1>, scalar_prefetch = 0 : i64, scratch_operands = 0 : i64, tpu.core_type = #tpu.core_type<tc>, window_params = [{transform_indices = @transform_0, window_bounds = array<i64: 8, 16>}, {pipeline_mode = #tpu.pipeline_mode<synchronous>, transform_indices = @transform_1, window_bounds = array<i64: 16, 256>}, {pipeline_mode = #tpu.pipeline_mode<synchronous>, transform_indices = @transform_2, window_bounds = array<i64: 1, 256>}, {pipeline_mode = #tpu.pipeline_mode<synchronous>, transform_indices = @transform_3, window_bounds = array<i64: 256, 256>}, {pipeline_mode = #tpu.pipeline_mode<synchronous>, transform_indices = @transform_4, window_bounds = array<i64: 1, 256>}, {pipeline_mode = #tpu.pipeline_mode<synchronous>, transform_indices = @transform_5, window_bounds = array<i64: 256, 512>}, {pipeline_mode = #tpu.pipeline_mode<synchronous>, transform_indices = @transform_6, window_bounds = array<i64: 1, 512>}, {pipeline_mode = #tpu.pipeline_mode<synchronous>, transform_indices = @transform_7, window_bounds = array<i64: 512, 128>}, {pipeline_mode = #tpu.pipeline_mode<synchronous>, transform_indices = @transform_8, window_bounds = array<i64: 1, 128>}, {transform_indices = @transform_9, window_bounds = array<i64: 8, 128>}]} {
    %c0 = arith.constant 0 : index
    %c0_0 = arith.constant 0 : index
    %0 = vector.load %arg1[%c0, %c0_0] : memref<8x16xf32, #tpu.memory_space<vmem>>, vector<8x16xf32>
    %c0_1 = arith.constant 0 : index
    %c0_2 = arith.constant 0 : index
    %1 = vector.load %arg2[%c0_1, %c0_2] : memref<16x256xf32, #tpu.memory_space<vmem>>, vector<16x256xf32>
    %cst = arith.constant dense<0.000000e+00> : vector<8x256xf32>
    %2 = tpu.matmul %0, %1, %cst {dimension_numbers = #tpu.dot_dimension_numbers<[1], [0], [0], [1], [0, 0, 1, 1], [], []>} : vector<8x16xf32>, vector<16x256xf32>, vector<8x256xf32> -> vector<8x256xf32>
    %c0_3 = arith.constant 0 : index
    %c0_4 = arith.constant 0 : index
    %3 = vector.load %arg3[%c0_3, %c0_4] : memref<1x256xf32, #tpu.memory_space<vmem>>, vector<1x256xf32>
    %4 = vector.broadcast %3 : vector<1x256xf32> to vector<8x256xf32>
    %5 = arith.addf %2, %4 : vector<8x256xf32>
    %cst_5 = arith.constant 0.000000e+00 : f32
    %6 = vector.broadcast %cst_5 : f32 to vector<8x256xf32>
    %7 = arith.maximumf %5, %6 : vector<8x256xf32>
    %c0_6 = arith.constant 0 : index
    %c0_7 = arith.constant 0 : index
    %8 = vector.load %arg4[%c0_6, %c0_7] : memref<256x256xf32, #tpu.memory_space<vmem>>, vector<256x256xf32>
    %cst_8 = arith.constant dense<0.000000e+00> : vector<8x256xf32>
    %9 = tpu.matmul %7, %8, %cst_8 {dimension_numbers = #tpu.dot_dimension_numbers<[1], [0], [0], [1], [0, 0, 1, 1], [], []>} : vector<8x256xf32>, vector<256x256xf32>, vector<8x256xf32> -> vector<8x256xf32>
    %c0_9 = arith.constant 0 : index
    %c0_10 = arith.constant 0 : index
    %10 = vector.load %arg5[%c0_9, %c0_10] : memref<1x256xf32, #tpu.memory_space<vmem>>, vector<1x256xf32>
    %11 = vector.broadcast %10 : vector<1x256xf32> to vector<8x256xf32>
    %12 = arith.addf %9, %11 : vector<8x256xf32>
    %cst_11 = arith.constant 0.000000e+00 : f32
    %13 = vector.broadcast %cst_11 : f32 to vector<8x256xf32>
    %14 = arith.maximumf %12, %13 : vector<8x256xf32>
    %c0_12 = arith.constant 0 : index
    %c0_13 = arith.constant 0 : index
    %15 = vector.load %arg6[%c0_12, %c0_13] : memref<256x512xf32, #tpu.memory_space<vmem>>, vector<256x512xf32>
    %cst_14 = arith.constant dense<0.000000e+00> : vector<8x512xf32>
    %16 = tpu.matmul %14, %15, %cst_14 {dimension_numbers = #tpu.dot_dimension_numbers<[1], [0], [0], [1], [0, 0, 1, 1], [], []>} : vector<8x256xf32>, vector<256x512xf32>, vector<8x512xf32> -> vector<8x512xf32>
    %c0_15 = arith.constant 0 : index
    %c0_16 = arith.constant 0 : index
    %17 = vector.load %arg7[%c0_15, %c0_16] : memref<1x512xf32, #tpu.memory_space<vmem>>, vector<1x512xf32>
    %18 = vector.broadcast %17 : vector<1x512xf32> to vector<8x512xf32>
    %19 = arith.addf %16, %18 : vector<8x512xf32>
    %cst_17 = arith.constant 0.000000e+00 : f32
    %20 = vector.broadcast %cst_17 : f32 to vector<8x512xf32>
    %21 = arith.maximumf %19, %20 : vector<8x512xf32>
    %c0_18 = arith.constant 0 : index
    %c0_19 = arith.constant 0 : index
    %22 = vector.load %arg8[%c0_18, %c0_19] : memref<512x128xf32, #tpu.memory_space<vmem>>, vector<512x128xf32>
    %cst_20 = arith.constant dense<0.000000e+00> : vector<8x128xf32>
    %23 = tpu.matmul %21, %22, %cst_20 {dimension_numbers = #tpu.dot_dimension_numbers<[1], [0], [0], [1], [0, 0, 1, 1], [], []>} : vector<8x512xf32>, vector<512x128xf32>, vector<8x128xf32> -> vector<8x128xf32>
    %c0_21 = arith.constant 0 : index
    %c0_22 = arith.constant 0 : index
    %24 = vector.load %arg9[%c0_21, %c0_22] : memref<1x128xf32, #tpu.memory_space<vmem>>, vector<1x128xf32>
    %25 = vector.broadcast %24 : vector<1x128xf32> to vector<8x128xf32>
    %26 = arith.addf %23, %25 : vector<8x128xf32>
    %c0_23 = arith.constant 0 : index
    %c0_24 = arith.constant 0 : index
    %27 = vector.load %arg10[%c0_23, %c0_24] : memref<8x128xf32, #tpu.memory_space<vmem>>, vector<8x128xf32>
    tpu.vector_store %arg10[%c0_23, %c0_24], %26 {strides = array<i32>} : memref<8x128xf32, #tpu.memory_space<vmem>>, vector<8x128xf32>,
    return
  }
  func.func @transform_0(%arg0: i32) -> (i32, i32) {
    %c0_i32 = arith.constant 0 : i32
    %c0_i32_0 = arith.constant 0 : i32
    return %arg0, %c0_i32 : i32, i32
  }
  func.func @transform_1(%arg0: i32) -> (i32, i32) {
    %c0_i32 = arith.constant 0 : i32
    %c0_i32_0 = arith.constant 0 : i32
    %c0_i32_1 = arith.constant 0 : i32
    return %c0_i32, %c0_i32_0 : i32, i32
  }
  func.func @transform_2(%arg0: i32) -> (i32, i32) {
    %c0_i32 = arith.constant 0 : i32
    %c0_i32_0 = arith.constant 0 : i32
    %c0_i32_1 = arith.constant 0 : i32
    return %c0_i32, %c0_i32_0 : i32, i32
  }
  func.func @transform_3(%arg0: i32) -> (i32, i32) {
    %c0_i32 = arith.constant 0 : i32
    %c0_i32_0 = arith.constant 0 : i32
    %c0_i32_1 = arith.constant 0 : i32
    return %c0_i32, %c0_i32_0 : i32, i32
  }
  func.func @transform_4(%arg0: i32) -> (i32, i32) {
    %c0_i32 = arith.constant 0 : i32
    %c0_i32_0 = arith.constant 0 : i32
    %c0_i32_1 = arith.constant 0 : i32
    return %c0_i32, %c0_i32_0 : i32, i32
  }
  func.func @transform_5(%arg0: i32) -> (i32, i32) {
    %c0_i32 = arith.constant 0 : i32
    %c0_i32_0 = arith.constant 0 : i32
    %c0_i32_1 = arith.constant 0 : i32
    return %c0_i32, %c0_i32_0 : i32, i32
  }
  func.func @transform_6(%arg0: i32) -> (i32, i32) {
    %c0_i32 = arith.constant 0 : i32
    %c0_i32_0 = arith.constant 0 : i32
    %c0_i32_1 = arith.constant 0 : i32
    return %c0_i32, %c0_i32_0 : i32, i32
  }
  func.func @transform_7(%arg0: i32) -> (i32, i32) {
    %c0_i32 = arith.constant 0 : i32
    %c0_i32_0 = arith.constant 0 : i32
    %c0_i32_1 = arith.constant 0 : i32
    return %c0_i32, %c0_i32_0 : i32, i32
  }
  func.func @transform_8(%arg0: i32) -> (i32, i32) {
    %c0_i32 = arith.constant 0 : i32
    %c0_i32_0 = arith.constant 0 : i32
    %c0_i32_1 = arith.constant 0 : i32
    return %c0_i32, %c0_i32_0 : i32, i32
  }
  func.func @transform_9(%arg0: i32) -> (i32, i32) {
    %c0_i32 = arith.constant 0 : i32
    %c0_i32_0 = arith.constant 0 : i32
    return %arg0, %c0_i32 : i32, i32
  }
}

</mosaic_0001>

<llo_original>
// kernel: tpu_custom_call.1
$region0: #{tpu_custom_call.1}
  #allocation0 [shape = 'u32[]', space=smem, size = 0x4, offset = 0x4, fixed_abs, tag = 'smem constant byte address 0x4 - core index']
  #allocation1 [shape = 'u32[72,128]{1,0:T(1,128)}', space=vmem, size = 0x9000, scoped, tag = 'internal scratch']
  %s0 = inlined_call_operand.hbm [shape: f32[8,16], index: 0, kind: input, shape index: {}]
  %s1 = inlined_call_operand.hbm [shape: f32[16,256], index: 1, kind: input, shape index: {}]
  %s2 = inlined_call_operand.hbm [shape: f32[1,256], index: 2, kind: input, shape index: {}]
  %s3 = inlined_call_operand.hbm [shape: f32[256,256], index: 3, kind: input, shape index: {}]
  %s4 = inlined_call_operand.hbm [shape: f32[1,256], index: 4, kind: input, shape index: {}]
  %s5 = inlined_call_operand.hbm [shape: f32[256,512], index: 5, kind: input, shape index: {}]
  %s6 = inlined_call_operand.vmem [shape: f32[1,512], index: 6, kind: input, shape index: {}]
  %s7 = inlined_call_operand.hbm [shape: f32[512,128], index: 7, kind: input, shape index: {}]
  %s8 = inlined_call_operand.vmem [shape: f32[1,128], index: 8, kind: input, shape index: {}]
  %s9 = inlined_call_operand.hbm [shape: f32[8,128], index: 9, kind: output, shape index: {}]
  %s10 = sld [smem:[#allocation0]]
  $region74: #{tpu_custom_call.1} parent=0
    _
  %s12 = ssub.s32 1, %s10
  %s13 = scalar_select 0, %s12, %s10
  $region1: #{tpu_custom_call.1} parent=0
    #allocation2 [shape = 'u8[4096]{0}', space=vmem, size = 0x1000, scoped, tag = 'input window, operand 0, single buffered']
    #allocation3 [shape = 's32[1]{0}', space=sflag, size = 0x4, scoped, tag = 'scoped memory for tpu_custom_call.1']
    #allocation4 [shape = 's32[1]{0}', space=sflag, size = 0x4, scoped, tag = 'scoped memory for tpu_custom_call.1']
    #allocation5 [shape = 'u8[16384]{0}', space=vmem, size = 0x4000, scoped, tag = 'input window, operand 1, single buffered']
    #allocation6 [shape = 's32[1]{0}', space=sflag, size = 0x4, scoped, tag = 'scoped memory for tpu_custom_call.1']
    #allocation7 [shape = 'u8[1024]{0}', space=vmem, size = 0x400, scoped, tag = 'input window, operand 2, single buffered']
    #allocation8 [shape = 'u8[262144]{0}', space=vmem, size = 0x40000, scoped, tag = 'input window, operand 3, single buffered']
    #allocation9 [shape = 's32[1]{0}', space=sflag, size = 0x4, scoped, tag = 'scoped memory for tpu_custom_call.1']
    #allocation10 [shape = 'u8[1024]{0}', space=vmem, size = 0x400, scoped, tag = 'input window, operand 4, single buffered']
    #allocation11 [shape = 'u8[524288]{0}', space=vmem, size = 0x80000, scoped, tag = 'input window, operand 5, single buffered']
    #allocation12 [shape = 's32[1]{0}', space=sflag, size = 0x4, scoped, tag = 'scoped memory for tpu_custom_call.1']
    #allocation13 [shape = 'u8[262144]{0}', space=vmem, size = 0x40000, scoped, tag = 'input window, operand 7, single buffered']
    #allocation14 [shape = 'u8[4096]{0}', space=vmem, size = 0x1000, scoped, tag = 'output window, operand 0, single buffered']
    %14 = vsyncpa [#allocation3], 0
    %15 = vsyncpa [#allocation6], 0
    %16 = vsyncpa [#allocation9], 0
    %17 = vsyncpa [#allocation12], 0
    %18 = vsyncpa [#allocation4], 0
    // Predicated region
    $region2: #{tpu_custom_call.1} parent=1 // pred_check
      _
    $region3: #{tpu_custom_call.1} parent=1 // pred_check_branch
      %20 = sbr.rel (0) target = $region5
    $region4: #{tpu_custom_call.1} parent=1 // pred_region
      %22 = vsyncadd [#allocation3], 0
      %s24 = sshll.u32 %s0, 4
      %s25 = int_to_ptr.hbm [resolvable:$true] %s24
      %s26 = sshll.u32 [#allocation2], 4
      %s27 = int_to_ptr.vmem [resolvable:$true] %s26
      %29 = dma.hbm_to_vmem [thread:$0]  %s25, 128, %s27, [#allocation3]
    $region5: #{tpu_custom_call.1} parent=1 // pred_fallthru
      _
    // Predicated region
    $region6: #{tpu_custom_call.1} parent=1 // pred_check
      _
    $region7: #{tpu_custom_call.1} parent=1 // pred_check_branch
      %31 = sbr.rel (0) target = $region9
    $region8: #{tpu_custom_call.1} parent=1 // pred_region
      %33 = vsyncadd [#allocation6], 0
      %s34 = sshll.u32 %s1, 4
      %s35 = int_to_ptr.hbm [resolvable:$true] %s34
      %s36 = sshll.u32 [#allocation5], 4
      %s37 = int_to_ptr.vmem [resolvable:$true] %s36
      %42 = dma.hbm_to_vmem [thread:$0]  %s35, 512, %s37, [#allocation6], 256, 256, 16
    $region9: #{tpu_custom_call.1} parent=1 // pred_fallthru
      _
    // Predicated region
    $region10: #{tpu_custom_call.1} parent=1 // pred_check
      _
    $region11: #{tpu_custom_call.1} parent=1 // pred_check_branch
      %44 = sbr.rel (0) target = $region13
    $region12: #{tpu_custom_call.1} parent=1 // pred_region
      %46 = vsyncadd [#allocation6], 0
      %s48 = sshll.u32 %s2, 4
      %s49 = int_to_ptr.hbm [resolvable:$true] %s48
      %s50 = sshll.u32 [#allocation7], 4
      %s51 = int_to_ptr.vmem [resolvable:$true] %s50
      %53 = dma.hbm_to_vmem [thread:$0]  %s49, 32, %s51, [#allocation6]
    $region13: #{tpu_custom_call.1} parent=1 // pred_fallthru
      _
    // Predicated region
    $region14: #{tpu_custom_call.1} parent=1 // pred_check
      _
    $region15: #{tpu_custom_call.1} parent=1 // pred_check_branch
      %55 = sbr.rel (0) target = $region17
    $region16: #{tpu_custom_call.1} parent=1 // pred_region
      %57 = vsyncadd [#allocation9], 0
      %s58 = sshll.u32 %s3, 4
      %s59 = int_to_ptr.hbm [resolvable:$true] %s58
      %s60 = sshll.u32 [#allocation8], 4
      %s61 = int_to_ptr.vmem [resolvable:$true] %s60
      %66 = dma.hbm_to_vmem [thread:$0]  %s59, 8192, %s61, [#allocation9], 256, 256, 16
    $region17: #{tpu_custom_call.1} parent=1 // pred_fallthru
      _
    // Predicated region
    $region18: #{tpu_custom_call.1} parent=1 // pred_check
      _
    $region19: #{tpu_custom_call.1} parent=1 // pred_check_branch
      %68 = sbr.rel (0) target = $region21
    $region20: #{tpu_custom_call.1} parent=1 // pred_region
      %70 = vsyncadd [#allocation9], 0
      %s72 = sshll.u32 %s4, 4
      %s73 = int_to_ptr.hbm [resolvable:$true] %s72
      %s74 = sshll.u32 [#allocation10], 4
      %s75 = int_to_ptr.vmem [resolvable:$true] %s74
      %77 = dma.hbm_to_vmem [thread:$0]  %s73, 32, %s75, [#allocation9]
    $region21: #{tpu_custom_call.1} parent=1 // pred_fallthru
      _
    // Predicated region
    $region22: #{tpu_custom_call.1} parent=1 // pred_check
      _
    $region23: #{tpu_custom_call.1} parent=1 // pred_check_branch
      %79 = sbr.rel (0) target = $region25
    $region24: #{tpu_custom_call.1} parent=1 // pred_region
      %81 = vsyncadd [#allocation12], 0
      %s82 = sshll.u32 %s5, 4
      %s83 = int_to_ptr.hbm [resolvable:$true] %s82
      %s84 = sshll.u32 [#allocation11], 4
      %s85 = int_to_ptr.vmem [resolvable:$true] %s84
      %90 = dma.hbm_to_vmem [thread:$0]  %s83, 16384, %s85, [#allocation12], 512, 512, 32
    $region25: #{tpu_custom_call.1} parent=1 // pred_fallthru
      _
    // Predicated region
    $region26: #{tpu_custom_call.1} parent=1 // pred_check
      _
    $region27: #{tpu_custom_call.1} parent=1 // pred_check_branch
      %92 = sbr.rel (0) target = $region29
    $region28: #{tpu_custom_call.1} parent=1 // pred_region
      _
    $region29: #{tpu_custom_call.1} parent=1 // pred_fallthru
      _
    // Predicated region
    $region30: #{tpu_custom_call.1} parent=1 // pred_check
      _
    $region31: #{tpu_custom_call.1} parent=1 // pred_check_branch
      %94 = sbr.rel (0) target = $region33
    $region32: #{tpu_custom_call.1} parent=1 // pred_region
      %96 = vsyncadd [#allocation12], 0
      %s97 = sshll.u32 %s7, 4
      %s98 = int_to_ptr.hbm [resolvable:$true] %s97
      %s99 = sshll.u32 [#allocation13], 4
      %s100 = int_to_ptr.vmem [resolvable:$true] %s99
      %105 = dma.hbm_to_vmem [thread:$0]  %s98, 8192, %s100, [#allocation12], 128, 128, 8
    $region33: #{tpu_custom_call.1} parent=1 // pred_fallthru
      _
    // Predicated region
    $region34: #{tpu_custom_call.1} parent=1 // pred_check
      _
    $region35: #{tpu_custom_call.1} parent=1 // pred_check_branch
      %107 = sbr.rel (0) target = $region37
    $region36: #{tpu_custom_call.1} parent=1 // pred_region
      _
    $region37: #{tpu_custom_call.1} parent=1 // pred_fallthru
      _
    // Predicated region
    $region38: #{tpu_custom_call.1} parent=1 // pred_check
      _
    $region39: #{tpu_custom_call.1} parent=1 // pred_check_branch
      %109 = sbr.rel (0) target = $region41
    $region40: #{tpu_custom_call.1} parent=1 // pred_region
      %111 = dma.done [#allocation3], 128
    $region41: #{tpu_custom_call.1} parent=1 // pred_fallthru
      _
    // Predicated region
    $region42: #{tpu_custom_call.1} parent=1 // pred_check
      _
    $region43: #{tpu_custom_call.1} parent=1 // pred_check_branch
      %113 = sbr.rel (0) target = $region45
    $region44: #{tpu_custom_call.1} parent=1 // pred_region
      %115 = dma.done [#allocation6], 512
    $region45: #{tpu_custom_call.1} parent=1 // pred_fallthru
      _
    // Predicated region
    $region46: #{tpu_custom_call.1} parent=1 // pred_check
      _
    $region47: #{tpu_custom_call.1} parent=1 // pred_check_branch
      %117 = sbr.rel (0) target = $region49
    $region48: #{tpu_custom_call.1} parent=1 // pred_region
      %119 = dma.done [#allocation6], 32
    $region49: #{tpu_custom_call.1} parent=1 // pred_fallthru
      _
    // Predicated region
    $region50: #{tpu_custom_call.1} parent=1 // pred_check
      _
    $region51: #{tpu_custom_call.1} parent=1 // pred_check_branch
      %121 = sbr.rel (0) target = $region53
    $region52: #{tpu_custom_call.1} parent=1 // pred_region
      %123 = dma.done [#allocation9], 8192
    $region53: #{tpu_custom_call.1} parent=1 // pred_fallthru
      _
    // Predicated region
    $region54: #{tpu_custom_call.1} parent=1 // pred_check
      _
    $region55: #{tpu_custom_call.1} parent=1 // pred_check_branch
      %125 = sbr.rel (0) target = $region57
    $region56: #{tpu_custom_call.1} parent=1 // pred_region
      %127 = dma.done [#allocation9], 32
    $region57: #{tpu_custom_call.1} parent=1 // pred_fallthru
      _
    // Predicated region
    $region58: #{tpu_custom_call.1} parent=1 // pred_check
      _
    $region59: #{tpu_custom_call.1} parent=1 // pred_check_branch
      %129 = sbr.rel (0) target = $region61
    $region60: #{tpu_custom_call.1} parent=1 // pred_region
      %131 = dma.done [#allocation12], 16384
    $region61: #{tpu_custom_call.1} parent=1 // pred_fallthru
      _
    // Predicated region
    $region62: #{tpu_custom_call.1} parent=1 // pred_check
      _
    $region63: #{tpu_custom_call.1} parent=1 // pred_check_branch
      %133 = sbr.rel (0) target = $region65
    $region64: #{tpu_custom_call.1} parent=1 // pred_region
      %135 = dma.done [#allocation12], 8192
    $region65: #{tpu_custom_call.1} parent=1 // pred_fallthru
      _
    %v136 = vld [vmem:[#allocation2] sm:$0xff]
    %v137 = vld [vmem:[#allocation5] sm:$0xff]
    %v138 = vld [vmem:[#allocation5 + $0x8] sm:$0xff]
    %v139 = vld [vmem:[#allocation5 + $0x10] sm:$0xff]
    %v140 = vld [vmem:[#allocation5 + $0x18] sm:$0xff]
    %v141 = vld [vmem:[#allocation7] sm:$0x3]
    %v143 = vperm.slane %v141, 0
    %v144 = vperm.slane %v141, 1
    %vm147 = vcmask 130048
    %v149 = vsel %vm147, %v136, 0
    %151 = vmatpush.msra.mxu0 0.0
    %152 = vmatpush.msra.mxu0 0.0
    %153 = vmatpush.msra.mxu0 0.0
    %154 = vmatpush.msra.mxu0 0.0
    %155 = vmatpush.msra.mxu0 0.0
    %156 = vmatpush.msra.mxu0 0.0
    %157 = vmatpush.msra.mxu0 0.0
    %158 = vmatpush.msra.mxu0 0.0
    %159 = vmatpush.msra.mxu0 0.0
    %160 = vmatpush.msra.mxu0 0.0
    %161 = vmatpush.msra.mxu0 0.0
    %162 = vmatpush.msra.mxu0 0.0
    %163 = vmatpush.msra.mxu0 0.0
    %164 = vmatpush.msra.mxu0 0.0
    %165 = vmatpush.msra.mxu0 %v139
    %166 = vmatpush.msra.mxu0 %v137
    %167 = vmatmul.f32.gmra.mxu0 %v149
    %v168 = vpop.f32.mrf.mxu0
    %v169 = vadd.f32 %v143, %v168
    %170 = vdwg.mxu0
    %171 = vmatpush.msra.mxu0 0.0
    %172 = vmatpush.msra.mxu0 0.0
    %173 = vmatpush.msra.mxu0 0.0
    %174 = vmatpush.msra.mxu0 0.0
    %175 = vmatpush.msra.mxu0 0.0
    %176 = vmatpush.msra.mxu0 0.0
    %177 = vmatpush.msra.mxu0 0.0
    %178 = vmatpush.msra.mxu0 0.0
    %179 = vmatpush.msra.mxu0 0.0
    %180 = vmatpush.msra.mxu0 0.0
    %181 = vmatpush.msra.mxu0 0.0
    %182 = vmatpush.msra.mxu0 0.0
    %183 = vmatpush.msra.mxu0 0.0
    %184 = vmatpush.msra.mxu0 0.0
    %185 = vmatpush.msra.mxu0 %v140
    %186 = vmatpush.msra.mxu0 %v138
    %187 = vmatmul.f32.gmra.mxu0 %v149
    %v188 = vpop.f32.mrf.mxu0
    %v189 = vadd.f32 %v144, %v188
    %190 = vdwg.mxu0
    %v191 = vmax.f32 %v169, 0.0
    %v192 = vmax.f32 %v189, 0.0
    %v193 = vld [vmem:[#allocation8] sm:$0xff]
    %v194 = vld [vmem:[#allocation8 + $0x8] sm:$0xff]
    %v195 = vld [vmem:[#allocation8 + $0x10] sm:$0xff]
    %v196 = vld [vmem:[#allocation8 + $0x18] sm:$0xff]
    %v197 = vld [vmem:[#allocation8 + $0x20] sm:$0xff]
    %v198 = vld [vmem:[#allocation8 + $0x28] sm:$0xff]
    %v199 = vld [vmem:[#allocation8 + $0x30] sm:$0xff]
    %v200 = vld [vmem:[#allocation8 + $0x38] sm:$0xff]
    %v201 = vld [vmem:[#allocation8 + $0x40] sm:$0xff]
    %v202 = vld [vmem:[#allocation8 + $0x48] sm:$0xff]
    %v203 = vld [vmem:[#allocation8 + $0x50] sm:$0xff]
    %v204 = vld [vmem:[#allocation8 + $0x58] sm:$0xff]
    %v205 = vld [vmem:[#allocation8 + $0x60] sm:$0xff]
    %v206 = vld [vmem:[#allocation8 + $0x68] sm:$0xff]
    %v207 = vld [vmem:[#allocation8 + $0x70] sm:$0xff]
    %v208 = vld [vmem:[#allocation8 + $0x78] sm:$0xff]
    %v209 = vld [vmem:[#allocation8 + $0x80] sm:$0xff]
    %v210 = vld [vmem:[#allocation8 + $0x88] sm:$0xff]
    %v211 = vld [vmem:[#allocation8 + $0x90] sm:$0xff]
    %v212 = vld [vmem:[#allocation8 + $0x98] sm:$0xff]
    %v213 = vld [vmem:[#allocation8 + $0xa0] sm:$0xff]
    %v214 = vld [vmem:[#allocation8 + $0xa8] sm:$0xff]
    %v215 = vld [vmem:[#allocation8 + $0xb0] sm:$0xff]
    %v216 = vld [vmem:[#allocation8 + $0xb8] sm:$0xff]
    %v217 = vld [vmem:[#allocation8 + $0xc0] sm:$0xff]
    %v218 = vld [vmem:[#allocation8 + $0xc8] sm:$0xff]
    %v219 = vld [vmem:[#allocation8 + $0xd0] sm:$0xff]
    %v220 = vld [vmem:[#allocation8 + $0xd8] sm:$0xff]
    %v221 = vld [vmem:[#allocation8 + $0xe0] sm:$0xff]
    %v222 = vld [vmem:[#allocation8 + $0xe8] sm:$0xff]
    %v223 = vld [vmem:[#allocation8 + $0xf0] sm:$0xff]
    %v224 = vld [vmem:[#allocation8 + $0xf8] sm:$0xff]
    %v225 = vld [vmem:[#allocation8 + $0x100] sm:$0xff]
    %v226 = vld [vmem:[#allocation8 + $0x108] sm:$0xff]
    %v227 = vld [vmem:[#allocation8 + $0x110] sm:$0xff]
    %v228 = vld [vmem:[#allocation8 + $0x118] sm:$0xff]
    %v229 = vld [vmem:[#allocation8 + $0x120] sm:$0xff]
    %v230 = vld [vmem:[#allocation8 + $0x128] sm:$0xff]
    %v231 = vld [vmem:[#allocation8 + $0x130] sm:$0xff]
    %v232 = vld [vmem:[#allocation8 + $0x138] sm:$0xff]
    %v233 = vld [vmem:[#allocation8 + $0x140] sm:$0xff]
    %v234 = vld [vmem:[#allocation8 + $0x148] sm:$0xff]
    %v235 = vld [vmem:[#allocation8 + $0x150] sm:$0xff]
    %v236 = vld [vmem:[#allocation8 + $0x158] sm:$0xff]
    %v237 = vld [vmem:[#allocation8 + $0x160] sm:$0xff]
    %v238 = vld [vmem:[#allocation8 + $0x168] sm:$0xff]
    %v239 = vld [vmem:[#allocation8 + $0x170] sm:$0xff]
    %v240 = vld [vmem:[#allocation8 + $0x178] sm:$0xff]
    %v241 = vld [vmem:[#allocation8 + $0x180] sm:$0xff]
    %v242 = vld [vmem:[#allocation8 + $0x188] sm:$0xff]
    %v243 = vld [vmem:[#allocation8 + $0x190] sm:$0xff]
    %v244 = vld [vmem:[#allocation8 + $0x198] sm:$0xff]
    %v245 = vld [vmem:[#allocation8 + $0x1a0] sm:$0xff]
    %v246 = vld [vmem:[#allocation8 + $0x1a8] sm:$0xff]
    %v247 = vld [vmem:[#allocation8 + $0x1b0] sm:$0xff]
    %v248 = vld [vmem:[#allocation8 + $0x1b8] sm:$0xff]
    %v249 = vld [vmem:[#allocation8 + $0x1c0] sm:$0xff]
    %v250 = vld [vmem:[#allocation8 + $0x1c8] sm:$0xff]
    %v251 = vld [vmem:[#allocation8 + $0x1d0] sm:$0xff]
    %v252 = vld [vmem:[#allocation8 + $0x1d8] sm:$0xff]
    %v253 = vld [vmem:[#allocation8 + $0x1e0] sm:$0xff]
    %v254 = vld [vmem:[#allocation8 + $0x1e8] sm:$0xff]
    %v255 = vld [vmem:[#allocation8 + $0x1f0] sm:$0xff]
    %v256 = vld [vmem:[#allocation8 + $0x1f8] sm:$0xff]
    %v257 = vld [vmem:[#allocation10] sm:$0x3]
    %v259 = vperm.slane %v257, 0
    %v260 = vperm.slane %v257, 1
    %263 = vmatpush.msra.mxu0 %v223
    %264 = vmatpush.msra.mxu0 %v221
    %265 = vmatpush.msra.mxu0 %v219
    %266 = vmatpush.msra.mxu0 %v217
    %267 = vmatpush.msra.mxu0 %v215
    %268 = vmatpush.msra.mxu0 %v213
    %269 = vmatpush.msra.mxu0 %v211
    %270 = vmatpush.msra.mxu0 %v209
    %271 = vmatpush.msra.mxu0 %v207
    %272 = vmatpush.msra.mxu0 %v205
    %273 = vmatpush.msra.mxu0 %v203
    %274 = vmatpush.msra.mxu0 %v201
    %275 = vmatpush.msra.mxu0 %v199
    %276 = vmatpush.msra.mxu0 %v197
    %277 = vmatpush.msra.mxu0 %v195
    %278 = vmatpush.msra.mxu0 %v193
    %279 = vmatmul.f32.gmra.mxu0 %v191
    %v280 = vpop.f32.mrf.mxu0
    %v281 = vadd.f32 %v259, %v280
    %282 = vdwg.mxu0
    %283 = vmatpush.msra.mxu0 %v255
    %284 = vmatpush.msra.mxu0 %v253
    %285 = vmatpush.msra.mxu0 %v251
    %286 = vmatpush.msra.mxu0 %v249
    %287 = vmatpush.msra.mxu0 %v247
    %288 = vmatpush.msra.mxu0 %v245
    %289 = vmatpush.msra.mxu0 %v243
    %290 = vmatpush.msra.mxu0 %v241
    %291 = vmatpush.msra.mxu0 %v239
    %292 = vmatpush.msra.mxu0 %v237
    %293 = vmatpush.msra.mxu0 %v235
    %294 = vmatpush.msra.mxu0 %v233
    %295 = vmatpush.msra.mxu0 %v231
    %296 = vmatpush.msra.mxu0 %v229
    %297 = vmatpush.msra.mxu0 %v227
    %298 = vmatpush.msra.mxu0 %v225
    %299 = vmatmul.f32.gmra.mxu0 %v192
    %v300 = vpop.f32.mrf.mxu0
    %v301 = vadd.f32 %v281, %v300
    %302 = vdwg.mxu0
    %303 = vmatpush.msra.mxu0 %v224
    %304 = vmatpush.msra.mxu0 %v222
    %305 = vmatpush.msra.mxu0 %v220
    %306 = vmatpush.msra.mxu0 %v218
    %307 = vmatpush.msra.mxu0 %v216
    %308 = vmatpush.msra.mxu0 %v214
    %309 = vmatpush.msra.mxu0 %v212
    %310 = vmatpush.msra.mxu0 %v210
    %311 = vmatpush.msra.mxu0 %v208
    %312 = vmatpush.msra.mxu0 %v206
    %313 = vmatpush.msra.mxu0 %v204
    %314 = vmatpush.msra.mxu0 %v202
    %315 = vmatpush.msra.mxu0 %v200
    %316 = vmatpush.msra.mxu0 %v198
    %317 = vmatpush.msra.mxu0 %v196
    %318 = vmatpush.msra.mxu0 %v194
    %319 = vmatmul.f32.gmra.mxu0 %v191
    %v320 = vpop.f32.mrf.mxu0
    %v321 = vadd.f32 %v260, %v320
    %322 = vdwg.mxu0
    %323 = vmatpush.msra.mxu0 %v256
    %324 = vmatpush.msra.mxu0 %v254
    %325 = vmatpush.msra.mxu0 %v252
    %326 = vmatpush.msra.mxu0 %v250
    %327 = vmatpush.msra.mxu0 %v248
    %328 = vmatpush.msra.mxu0 %v246
    %329 = vmatpush.msra.mxu0 %v244
    %330 = vmatpush.msra.mxu0 %v242
    %331 = vmatpush.msra.mxu0 %v240
    %332 = vmatpush.msra.mxu0 %v238
    %333 = vmatpush.msra.mxu0 %v236
    %334 = vmatpush.msra.mxu0 %v234
    %335 = vmatpush.msra.mxu0 %v232
    %336 = vmatpush.msra.mxu0 %v230
    %337 = vmatpush.msra.mxu0 %v228
    %338 = vmatpush.msra.mxu0 %v226
    %339 = vmatmul.f32.gmra.mxu0 %v192
    %v340 = vpop.f32.mrf.mxu0
    %v341 = vadd.f32 %v321, %v340
    %342 = vdwg.mxu0
    %v343 = vmax.f32 %v301, 0.0
    %v344 = vmax.f32 %v341, 0.0
    %v345 = vld [vmem:[#allocation11] sm:$0xff]
    %v346 = vld [vmem:[#allocation11 + $0x8] sm:$0xff]
    %v347 = vld [vmem:[#allocation11 + $0x10] sm:$0xff]
    %v348 = vld [vmem:[#allocation11 + $0x18] sm:$0xff]
    %v349 = vld [vmem:[#allocation11 + $0x20] sm:$0xff]
    %v350 = vld [vmem:[#allocation11 + $0x28] sm:$0xff]
    %v351 = vld [vmem:[#allocation11 + $0x30] sm:$0xff]
    %v352 = vld [vmem:[#allocation11 + $0x38] sm:$0xff]
    %v353 = vld [vmem:[#allocation11 + $0x40] sm:$0xff]
    %v354 = vld [vmem:[#allocation11 + $0x48] sm:$0xff]
    %v355 = vld [vmem:[#allocation11 + $0x50] sm:$0xff]
    %v356 = vld [vmem:[#allocation11 + $0x58] sm:$0xff]
    %v357 = vld [vmem:[#allocation11 + $0x60] sm:$0xff]
    %v358 = vld [vmem:[#allocation11 + $0x68] sm:$0xff]
    %v359 = vld [vmem:[#allocation11 + $0x70] sm:$0xff]
    %v360 = vld [vmem:[#allocation11 + $0x78] sm:$0xff]
    %v361 = vld [vmem:[#allocation11 + $0x80] sm:$0xff]
    %v362 = vld [vmem:[#allocation11 + $0x88] sm:$0xff]
    %v363 = vld [vmem:[#allocation11 + $0x90] sm:$0xff]
    %v364 = vld [vmem:[#allocation11 + $0x98] sm:$0xff]
    %v365 = vld [vmem:[#allocation11 + $0xa0] sm:$0xff]
    %v366 = vld [vmem:[#allocation11 + $0xa8] sm:$0xff]
    %v367 = vld [vmem:[#allocation11 + $0xb0] sm:$0xff]
    %v368 = vld [vmem:[#allocation11 + $0xb8] sm:$0xff]
    %v369 = vld [vmem:[#allocation11 + $0xc0] sm:$0xff]
    %v370 = vld [vmem:[#allocation11 + $0xc8] sm:$0xff]
    %v371 = vld [vmem:[#allocation11 + $0xd0] sm:$0xff]
    %v372 = vld [vmem:[#allocation11 + $0xd8] sm:$0xff]
    %v373 = vld [vmem:[#allocation11 + $0xe0] sm:$0xff]
    %v374 = vld [vmem:[#allocation11 + $0xe8] sm:$0xff]
    %v375 = vld [vmem:[#allocation11 + $0xf0] sm:$0xff]
    %v376 = vld [vmem:[#allocation11 + $0xf8] sm:$0xff]
    %v377 = vld [vmem:[#allocation11 + $0x100] sm:$0xff]
    %v378 = vld [vmem:[#allocation11 + $0x108] sm:$0xff]
    %v379 = vld [vmem:[#allocation11 + $0x110] sm:$0xff]
    %v380 = vld [vmem:[#allocation11 + $0x118] sm:$0xff]
    %v381 = vld [vmem:[#allocation11 + $0x120] sm:$0xff]
    %v382 = vld [vmem:[#allocation11 + $0x128] sm:$0xff]
    %v383 = vld [vmem:[#allocation11 + $0x130] sm:$0xff]
    %v384 = vld [vmem:[#allocation11 + $0x138] sm:$0xff]
    %v385 = vld [vmem:[#allocation11 + $0x140] sm:$0xff]
    %v386 = vld [vmem:[#allocation11 + $0x148] sm:$0xff]
    %v387 = vld [vmem:[#allocation11 + $0x150] sm:$0xff]
    %v388 = vld [vmem:[#allocation11 + $0x158] sm:$0xff]
    %v389 = vld [vmem:[#allocation11 + $0x160] sm:$0xff]
    %v390 = vld [vmem:[#allocation11 + $0x168] sm:$0xff]
    %v391 = vld [vmem:[#allocation11 + $0x170] sm:$0xff]
    %v392 = vld [vmem:[#allocation11 + $0x178] sm:$0xff]
    %v393 = vld [vmem:[#allocation11 + $0x180] sm:$0xff]
    %v394 = vld [vmem:[#allocation11 + $0x188] sm:$0xff]
    %v395 = vld [vmem:[#allocation11 + $0x190] sm:$0xff]
    %v396 = vld [vmem:[#allocation11 + $0x198] sm:$0xff]
    %v397 = vld [vmem:[#allocation11 + $0x1a0] sm:$0xff]
    %v398 = vld [vmem:[#allocation11 + $0x1a8] sm:$0xff]
    %v399 = vld [vmem:[#allocation11 + $0x1b0] sm:$0xff]
    %v400 = vld [vmem:[#allocation11 + $0x1b8] sm:$0xff]
    %v401 = vld [vmem:[#allocation11 + $0x1c0] sm:$0xff]
    %v402 = vld [vmem:[#allocation11 + $0x1c8] sm:$0xff]
    %v403 = vld [vmem:[#allocation11 + $0x1d0] sm:$0xff]
    %v404 = vld [vmem:[#allocation11 + $0x1d8] sm:$0xff]
    %v405 = vld [vmem:[#allocation11 + $0x1e0] sm:$0xff]
    %v406 = vld [vmem:[#allocation11 + $0x1e8] sm:$0xff]
    %v407 = vld [vmem:[#allocation11 + $0x1f0] sm:$0xff]
    %v408 = vld [vmem:[#allocation11 + $0x1f8] sm:$0xff]
    %v409 = vld [vmem:[#allocation11 + $0x200] sm:$0xff]
    %v410 = vld [vmem:[#allocation11 + $0x208] sm:$0xff]
    %v411 = vld [vmem:[#allocation11 + $0x210] sm:$0xff]
    %v412 = vld [vmem:[#allocation11 + $0x218] sm:$0xff]
    %v413 = vld [vmem:[#allocation11 + $0x220] sm:$0xff]
    %v414 = vld [vmem:[#allocation11 + $0x228] sm:$0xff]
    %v415 = vld [vmem:[#allocation11 + $0x230] sm:$0xff]
    %v416 = vld [vmem:[#allocation11 + $0x238] sm:$0xff]
    %v417 = vld [vmem:[#allocation11 + $0x240] sm:$0xff]
    %v418 = vld [vmem:[#allocation11 + $0x248] sm:$0xff]
    %v419 = vld [vmem:[#allocation11 + $0x250] sm:$0xff]
    %v420 = vld [vmem:[#allocation11 + $0x258] sm:$0xff]
    %v421 = vld [vmem:[#allocation11 + $0x260] sm:$0xff]
    %v422 = vld [vmem:[#allocation11 + $0x268] sm:$0xff]
    %v423 = vld [vmem:[#allocation11 + $0x270] sm:$0xff]
    %v424 = vld [vmem:[#allocation11 + $0x278] sm:$0xff]
    %v425 = vld [vmem:[#allocation11 + $0x280] sm:$0xff]
    %v426 = vld [vmem:[#allocation11 + $0x288] sm:$0xff]
    %v427 = vld [vmem:[#allocation11 + $0x290] sm:$0xff]
    %v428 = vld [vmem:[#allocation11 + $0x298] sm:$0xff]
    %v429 = vld [vmem:[#allocation11 + $0x2a0] sm:$0xff]
    %v430 = vld [vmem:[#allocation11 + $0x2a8] sm:$0xff]
    %v431 = vld [vmem:[#allocation11 + $0x2b0] sm:$0xff]
    %v432 = vld [vmem:[#allocation11 + $0x2b8] sm:$0xff]
    %v433 = vld [vmem:[#allocation11 + $0x2c0] sm:$0xff]
    %v434 = vld [vmem:[#allocation11 + $0x2c8] sm:$0xff]
    %v435 = vld [vmem:[#allocation11 + $0x2d0] sm:$0xff]
    %v436 = vld [vmem:[#allocation11 + $0x2d8] sm:$0xff]
    %v437 = vld [vmem:[#allocation11 + $0x2e0] sm:$0xff]
    %v438 = vld [vmem:[#allocation11 + $0x2e8] sm:$0xff]
    %v439 = vld [vmem:[#allocation11 + $0x2f0] sm:$0xff]
    %v440 = vld [vmem:[#allocation11 + $0x2f8] sm:$0xff]
    %v441 = vld [vmem:[#allocation11 + $0x300] sm:$0xff]
    %v442 = vld [vmem:[#allocation11 + $0x308] sm:$0xff]
    %v443 = vld [vmem:[#allocation11 + $0x310] sm:$0xff]
    %v444 = vld [vmem:[#allocation11 + $0x318] sm:$0xff]
    %v445 = vld [vmem:[#allocation11 + $0x320] sm:$0xff]
    %v446 = vld [vmem:[#allocation11 + $0x328] sm:$0xff]
    %v447 = vld [vmem:[#allocation11 + $0x330] sm:$0xff]
    %v448 = vld [vmem:[#allocation11 + $0x338] sm:$0xff]
    %v449 = vld [vmem:[#allocation11 + $0x340] sm:$0xff]
    %v450 = vld [vmem:[#allocation11 + $0x348] sm:$0xff]
    %v451 = vld [vmem:[#allocation11 + $0x350] sm:$0xff]
    %v452 = vld [vmem:[#allocation11 + $0x358] sm:$0xff]
    %v453 = vld [vmem:[#allocation11 + $0x360] sm:$0xff]
    %v454 = vld [vmem:[#allocation11 + $0x368] sm:$0xff]
    %v455 = vld [vmem:[#allocation11 + $0x370] sm:$0xff]
    %v456 = vld [vmem:[#allocation11 + $0x378] sm:$0xff]
    %v457 = vld [vmem:[#allocation11 + $0x380] sm:$0xff]
    %v458 = vld [vmem:[#allocation11 + $0x388] sm:$0xff]
    %v459 = vld [vmem:[#allocation11 + $0x390] sm:$0xff]
    %v460 = vld [vmem:[#allocation11 + $0x398] sm:$0xff]
    %v461 = vld [vmem:[#allocation11 + $0x3a0] sm:$0xff]
    %v462 = vld [vmem:[#allocation11 + $0x3a8] sm:$0xff]
    %v463 = vld [vmem:[#allocation11 + $0x3b0] sm:$0xff]
    %v464 = vld [vmem:[#allocation11 + $0x3b8] sm:$0xff]
    %v465 = vld [vmem:[#allocation11 + $0x3c0] sm:$0xff]
    %v466 = vld [vmem:[#allocation11 + $0x3c8] sm:$0xff]
    %v467 = vld [vmem:[#allocation11 + $0x3d0] sm:$0xff]
    %v468 = vld [vmem:[#allocation11 + $0x3d8] sm:$0xff]
    %v469 = vld [vmem:[#allocation11 + $0x3e0] sm:$0xff]
    %v470 = vld [vmem:[#allocation11 + $0x3e8] sm:$0xff]
    %v471 = vld [vmem:[#allocation11 + $0x3f0] sm:$0xff]
    %v472 = vld [vmem:[#allocation11 + $0x3f8] sm:$0xff]
    %v473 = vld [vmem:[%s6] sm:$0xf]
    %v475 = vperm.slane %v473, 0
    %v476 = vperm.slane %v473, 1
    %v477 = vperm.slane %v473, 2
    %v478 = vperm.slane %v473, 3
    %483 = vmatpush.msra.mxu0 %v405
    %484 = vmatpush.msra.mxu0 %v401
    %485 = vmatpush.msra.mxu0 %v397
    %486 = vmatpush.msra.mxu0 %v393
    %487 = vmatpush.msra.mxu0 %v389
    %488 = vmatpush.msra.mxu0 %v385
    %489 = vmatpush.msra.mxu0 %v381
    %490 = vmatpush.msra.mxu0 %v377
    %491 = vmatpush.msra.mxu0 %v373
    %492 = vmatpush.msra.mxu0 %v369
    %493 = vmatpush.msra.mxu0 %v365
    %494 = vmatpush.msra.mxu0 %v361
    %495 = vmatpush.msra.mxu0 %v357
    %496 = vmatpush.msra.mxu0 %v353
    %497 = vmatpush.msra.mxu0 %v349
    %498 = vmatpush.msra.mxu0 %v345
    %499 = vmatmul.f32.gmra.mxu0 %v343
    %v500 = vpop.f32.mrf.mxu0
    %v501 = vadd.f32 %v475, %v500
    %502 = vdwg.mxu0
    %503 = vmatpush.msra.mxu0 %v469
    %504 = vmatpush.msra.mxu0 %v465
    %505 = vmatpush.msra.mxu0 %v461
    %506 = vmatpush.msra.mxu0 %v457
    %507 = vmatpush.msra.mxu0 %v453
    %508 = vmatpush.msra.mxu0 %v449
    %509 = vmatpush.msra.mxu0 %v445
    %510 = vmatpush.msra.mxu0 %v441
    %511 = vmatpush.msra.mxu0 %v437
    %512 = vmatpush.msra.mxu0 %v433
    %513 = vmatpush.msra.mxu0 %v429
    %514 = vmatpush.msra.mxu0 %v425
    %515 = vmatpush.msra.mxu0 %v421
    %516 = vmatpush.msra.mxu0 %v417
    %517 = vmatpush.msra.mxu0 %v413
    %518 = vmatpush.msra.mxu0 %v409
    %519 = vmatmul.f32.gmra.mxu0 %v344
    %v520 = vpop.f32.mrf.mxu0
    %v521 = vadd.f32 %v501, %v520
    %522 = vdwg.mxu0
    %523 = vmatpush.msra.mxu0 %v406
    %524 = vmatpush.msra.mxu0 %v402
    %525 = vmatpush.msra.mxu0 %v398
    %526 = vmatpush.msra.mxu0 %v394
    %527 = vmatpush.msra.mxu0 %v390
    %528 = vmatpush.msra.mxu0 %v386
    %529 = vmatpush.msra.mxu0 %v382
    %530 = vmatpush.msra.mxu0 %v378
    %531 = vmatpush.msra.mxu0 %v374
    %532 = vmatpush.msra.mxu0 %v370
    %533 = vmatpush.msra.mxu0 %v366
    %534 = vmatpush.msra.mxu0 %v362
    %535 = vmatpush.msra.mxu0 %v358
    %536 = vmatpush.msra.mxu0 %v354
    %537 = vmatpush.msra.mxu0 %v350
    %538 = vmatpush.msra.mxu0 %v346
    %539 = vmatmul.f32.gmra.mxu0 %v343
    %v540 = vpop.f32.mrf.mxu0
    %v541 = vadd.f32 %v476, %v540
    %542 = vdwg.mxu0
    %543 = vmatpush.msra.mxu0 %v470
    %544 = vmatpush.msra.mxu0 %v466
    %545 = vmatpush.msra.mxu0 %v462
    %546 = vmatpush.msra.mxu0 %v458
    %547 = vmatpush.msra.mxu0 %v454
    %548 = vmatpush.msra.mxu0 %v450
    %549 = vmatpush.msra.mxu0 %v446
    %550 = vmatpush.msra.mxu0 %v442
    %551 = vmatpush.msra.mxu0 %v438
    %552 = vmatpush.msra.mxu0 %v434
    %553 = vmatpush.msra.mxu0 %v430
    %554 = vmatpush.msra.mxu0 %v426
    %555 = vmatpush.msra.mxu0 %v422
    %556 = vmatpush.msra.mxu0 %v418
    %557 = vmatpush.msra.mxu0 %v414
    %558 = vmatpush.msra.mxu0 %v410
    %559 = vmatmul.f32.gmra.mxu0 %v344
    %v560 = vpop.f32.mrf.mxu0
    %v561 = vadd.f32 %v541, %v560
    %562 = vdwg.mxu0
    %563 = vmatpush.msra.mxu0 %v407
    %564 = vmatpush.msra.mxu0 %v403
    %565 = vmatpush.msra.mxu0 %v399
    %566 = vmatpush.msra.mxu0 %v395
    %567 = vmatpush.msra.mxu0 %v391
    %568 = vmatpush.msra.mxu0 %v387
    %569 = vmatpush.msra.mxu0 %v383
    %570 = vmatpush.msra.mxu0 %v379
    %571 = vmatpush.msra.mxu0 %v375
    %572 = vmatpush.msra.mxu0 %v371
    %573 = vmatpush.msra.mxu0 %v367
    %574 = vmatpush.msra.mxu0 %v363
    %575 = vmatpush.msra.mxu0 %v359
    %576 = vmatpush.msra.mxu0 %v355
    %577 = vmatpush.msra.mxu0 %v351
    %578 = vmatpush.msra.mxu0 %v347
    %579 = vmatmul.f32.gmra.mxu0 %v343
    %v580 = vpop.f32.mrf.mxu0
    %v581 = vadd.f32 %v477, %v580
    %582 = vdwg.mxu0
    %583 = vmatpush.msra.mxu0 %v471
    %584 = vmatpush.msra.mxu0 %v467
    %585 = vmatpush.msra.mxu0 %v463
    %586 = vmatpush.msra.mxu0 %v459
    %587 = vmatpush.msra.mxu0 %v455
    %588 = vmatpush.msra.mxu0 %v451
    %589 = vmatpush.msra.mxu0 %v447
    %590 = vmatpush.msra.mxu0 %v443
    %591 = vmatpush.msra.mxu0 %v439
    %592 = vmatpush.msra.mxu0 %v435
    %593 = vmatpush.msra.mxu0 %v431
    %594 = vmatpush.msra.mxu0 %v427
    %595 = vmatpush.msra.mxu0 %v423
    %596 = vmatpush.msra.mxu0 %v419
    %597 = vmatpush.msra.mxu0 %v415
    %598 = vmatpush.msra.mxu0 %v411
    %599 = vmatmul.f32.gmra.mxu0 %v344
    %v600 = vpop.f32.mrf.mxu0
    %v601 = vadd.f32 %v581, %v600
    %602 = vdwg.mxu0
    %603 = vmatpush.msra.mxu0 %v408
    %604 = vmatpush.msra.mxu0 %v404
    %605 = vmatpush.msra.mxu0 %v400
    %606 = vmatpush.msra.mxu0 %v396
    %607 = vmatpush.msra.mxu0 %v392
    %608 = vmatpush.msra.mxu0 %v388
    %609 = vmatpush.msra.mxu0 %v384
    %610 = vmatpush.msra.mxu0 %v380
    %611 = vmatpush.msra.mxu0 %v376
    %612 = vmatpush.msra.mxu0 %v372
    %613 = vmatpush.msra.mxu0 %v368
    %614 = vmatpush.msra.mxu0 %v364
    %615 = vmatpush.msra.mxu0 %v360
    %616 = vmatpush.msra.mxu0 %v356
    %617 = vmatpush.msra.mxu0 %v352
    %618 = vmatpush.msra.mxu0 %v348
    %619 = vmatmul.f32.gmra.mxu0 %v343
    %v620 = vpop.f32.mrf.mxu0
    %v621 = vadd.f32 %v478, %v620
    %622 = vdwg.mxu0
    %623 = vmatpush.msra.mxu0 %v472
    %624 = vmatpush.msra.mxu0 %v468
    %625 = vmatpush.msra.mxu0 %v464
    %626 = vmatpush.msra.mxu0 %v460
    %627 = vmatpush.msra.mxu0 %v456
    %628 = vmatpush.msra.mxu0 %v452
    %629 = vmatpush.msra.mxu0 %v448
    %630 = vmatpush.msra.mxu0 %v444
    %631 = vmatpush.msra.mxu0 %v440
    %632 = vmatpush.msra.mxu0 %v436
    %633 = vmatpush.msra.mxu0 %v432
    %634 = vmatpush.msra.mxu0 %v428
    %635 = vmatpush.msra.mxu0 %v424
    %636 = vmatpush.msra.mxu0 %v420
    %637 = vmatpush.msra.mxu0 %v416
    %638 = vmatpush.msra.mxu0 %v412
    %639 = vmatmul.f32.gmra.mxu0 %v344
    %v640 = vpop.f32.mrf.mxu0
    %v641 = vadd.f32 %v621, %v640
    %642 = vdwg.mxu0
    %v643 = vmax.f32 %v521, 0.0
    %v644 = vmax.f32 %v561, 0.0
    %v645 = vmax.f32 %v601, 0.0
    %v646 = vmax.f32 %v641, 0.0
    %v647 = vld [vmem:[#allocation13] sm:$0xff]
    %v648 = vld [vmem:[#allocation13 + $0x8] sm:$0xff]
    %v649 = vld [vmem:[#allocation13 + $0x10] sm:$0xff]
    %v650 = vld [vmem:[#allocation13 + $0x18] sm:$0xff]
    %v651 = vld [vmem:[#allocation13 + $0x20] sm:$0xff]
    %v652 = vld [vmem:[#allocation13 + $0x28] sm:$0xff]
    %v653 = vld [vmem:[#allocation13 + $0x30] sm:$0xff]
    %v654 = vld [vmem:[#allocation13 + $0x38] sm:$0xff]
    %v655 = vld [vmem:[#allocation13 + $0x40] sm:$0xff]
    %v656 = vld [vmem:[#allocation13 + $0x48] sm:$0xff]
    %v657 = vld [vmem:[#allocation13 + $0x50] sm:$0xff]
    %v658 = vld [vmem:[#allocation13 + $0x58] sm:$0xff]
    %v659 = vld [vmem:[#allocation13 + $0x60] sm:$0xff]
    %v660 = vld [vmem:[#allocation13 + $0x68] sm:$0xff]
    %v661 = vld [vmem:[#allocation13 + $0x70] sm:$0xff]
    %v662 = vld [vmem:[#allocation13 + $0x78] sm:$0xff]
    %v663 = vld [vmem:[#allocation13 + $0x80] sm:$0xff]
    %v664 = vld [vmem:[#allocation13 + $0x88] sm:$0xff]
    %v665 = vld [vmem:[#allocation13 + $0x90] sm:$0xff]
    %v666 = vld [vmem:[#allocation13 + $0x98] sm:$0xff]
    %v667 = vld [vmem:[#allocation13 + $0xa0] sm:$0xff]
    %v668 = vld [vmem:[#allocation13 + $0xa8] sm:$0xff]
    %v669 = vld [vmem:[#allocation13 + $0xb0] sm:$0xff]
    %v670 = vld [vmem:[#allocation13 + $0xb8] sm:$0xff]
    %v671 = vld [vmem:[#allocation13 + $0xc0] sm:$0xff]
    %v672 = vld [vmem:[#allocation13 + $0xc8] sm:$0xff]
    %v673 = vld [vmem:[#allocation13 + $0xd0] sm:$0xff]
    %v674 = vld [vmem:[#allocation13 + $0xd8] sm:$0xff]
    %v675 = vld [vmem:[#allocation13 + $0xe0] sm:$0xff]
    %v676 = vld [vmem:[#allocation13 + $0xe8] sm:$0xff]
    %v677 = vld [vmem:[#allocation13 + $0xf0] sm:$0xff]
    %v678 = vld [vmem:[#allocation13 + $0xf8] sm:$0xff]
    %v679 = vld [vmem:[#allocation13 + $0x100] sm:$0xff]
    %v680 = vld [vmem:[#allocation13 + $0x108] sm:$0xff]
    %v681 = vld [vmem:[#allocation13 + $0x110] sm:$0xff]
    %v682 = vld [vmem:[#allocation13 + $0x118] sm:$0xff]
    %v683 = vld [vmem:[#allocation13 + $0x120] sm:$0xff]
    %v684 = vld [vmem:[#allocation13 + $0x128] sm:$0xff]
    %v685 = vld [vmem:[#allocation13 + $0x130] sm:$0xff]
    %v686 = vld [vmem:[#allocation13 + $0x138] sm:$0xff]
    %v687 = vld [vmem:[#allocation13 + $0x140] sm:$0xff]
    %v688 = vld [vmem:[#allocation13 + $0x148] sm:$0xff]
    %v689 = vld [vmem:[#allocation13 + $0x150] sm:$0xff]
    %v690 = vld [vmem:[#allocation13 + $0x158] sm:$0xff]
    %v691 = vld [vmem:[#allocation13 + $0x160] sm:$0xff]
    %v692 = vld [vmem:[#allocation13 + $0x168] sm:$0xff]
    %v693 = vld [vmem:[#allocation13 + $0x170] sm:$0xff]
    %v694 = vld [vmem:[#allocation13 + $0x178] sm:$0xff]
    %v695 = vld [vmem:[#allocation13 + $0x180] sm:$0xff]
    %v696 = vld [vmem:[#allocation13 + $0x188] sm:$0xff]
    %v697 = vld [vmem:[#allocation13 + $0x190] sm:$0xff]
    %v698 = vld [vmem:[#allocation13 + $0x198] sm:$0xff]
    %v699 = vld [vmem:[#allocation13 + $0x1a0] sm:$0xff]
    %v700 = vld [vmem:[#allocation13 + $0x1a8] sm:$0xff]
    %v701 = vld [vmem:[#allocation13 + $0x1b0] sm:$0xff]
    %v702 = vld [vmem:[#allocation13 + $0x1b8] sm:$0xff]
    %v703 = vld [vmem:[#allocation13 + $0x1c0] sm:$0xff]
    %v704 = vld [vmem:[#allocation13 + $0x1c8] sm:$0xff]
    %v705 = vld [vmem:[#allocation13 + $0x1d0] sm:$0xff]
    %v706 = vld [vmem:[#allocation13 + $0x1d8] sm:$0xff]
    %v707 = vld [vmem:[#allocation13 + $0x1e0] sm:$0xff]
    %v708 = vld [vmem:[#allocation13 + $0x1e8] sm:$0xff]
    %v709 = vld [vmem:[#allocation13 + $0x1f0] sm:$0xff]
    %v710 = vld [vmem:[#allocation13 + $0x1f8] sm:$0xff]
    %v711 = vld [vmem:[%s8] sm:$0x1]
    %v713 = vperm.slane %v711, 0
    %715 = vmatpush.msra.mxu0 %v662
    %716 = vmatpush.msra.mxu0 %v661
    %717 = vmatpush.msra.mxu0 %v660
    %718 = vmatpush.msra.mxu0 %v659
    %719 = vmatpush.msra.mxu0 %v658
    %720 = vmatpush.msra.mxu0 %v657
    %721 = vmatpush.msra.mxu0 %v656
    %722 = vmatpush.msra.mxu0 %v655
    %723 = vmatpush.msra.mxu0 %v654
    %724 = vmatpush.msra.mxu0 %v653
    %725 = vmatpush.msra.mxu0 %v652
    %726 = vmatpush.msra.mxu0 %v651
    %727 = vmatpush.msra.mxu0 %v650
    %728 = vmatpush.msra.mxu0 %v649
    %729 = vmatpush.msra.mxu0 %v648
    %730 = vmatpush.msra.mxu0 %v647
    %731 = vmatmul.f32.gmra.mxu0 %v643
    %v732 = vpop.f32.mrf.mxu0
    %v733 = vadd.f32 %v713, %v732
    %734 = vdwg.mxu0
    %735 = vmatpush.msra.mxu0 %v678
    %736 = vmatpush.msra.mxu0 %v677
    %737 = vmatpush.msra.mxu0 %v676
    %738 = vmatpush.msra.mxu0 %v675
    %739 = vmatpush.msra.mxu0 %v674
    %740 = vmatpush.msra.mxu0 %v673
    %741 = vmatpush.msra.mxu0 %v672
    %742 = vmatpush.msra.mxu0 %v671
    %743 = vmatpush.msra.mxu0 %v670
    %744 = vmatpush.msra.mxu0 %v669
    %745 = vmatpush.msra.mxu0 %v668
    %746 = vmatpush.msra.mxu0 %v667
    %747 = vmatpush.msra.mxu0 %v666
    %748 = vmatpush.msra.mxu0 %v665
    %749 = vmatpush.msra.mxu0 %v664
    %750 = vmatpush.msra.mxu0 %v663
    %751 = vmatmul.f32.gmra.mxu0 %v644
    %v752 = vpop.f32.mrf.mxu0
    %v753 = vadd.f32 %v733, %v752
    %754 = vdwg.mxu0
    %755 = vmatpush.msra.mxu0 %v694
    %756 = vmatpush.msra.mxu0 %v693
    %757 = vmatpush.msra.mxu0 %v692
    %758 = vmatpush.msra.mxu0 %v691
    %759 = vmatpush.msra.mxu0 %v690
    %760 = vmatpush.msra.mxu0 %v689
    %761 = vmatpush.msra.mxu0 %v688
    %762 = vmatpush.msra.mxu0 %v687
    %763 = vmatpush.msra.mxu0 %v686
    %764 = vmatpush.msra.mxu0 %v685
    %765 = vmatpush.msra.mxu0 %v684
    %766 = vmatpush.msra.mxu0 %v683
    %767 = vmatpush.msra.mxu0 %v682
    %768 = vmatpush.msra.mxu0 %v681
    %769 = vmatpush.msra.mxu0 %v680
    %770 = vmatpush.msra.mxu0 %v679
    %771 = vmatmul.f32.gmra.mxu0 %v645
    %v772 = vpop.f32.mrf.mxu0
    %v773 = vadd.f32 %v753, %v772
    %774 = vdwg.mxu0
    %775 = vmatpush.msra.mxu0 %v710
    %776 = vmatpush.msra.mxu0 %v709
    %777 = vmatpush.msra.mxu0 %v708
    %778 = vmatpush.msra.mxu0 %v707
    %779 = vmatpush.msra.mxu0 %v706
    %780 = vmatpush.msra.mxu0 %v705
    %781 = vmatpush.msra.mxu0 %v704
    %782 = vmatpush.msra.mxu0 %v703
    %783 = vmatpush.msra.mxu0 %v702
    %784 = vmatpush.msra.mxu0 %v701
    %785 = vmatpush.msra.mxu0 %v700
    %786 = vmatpush.msra.mxu0 %v699
    %787 = vmatpush.msra.mxu0 %v698
    %788 = vmatpush.msra.mxu0 %v697
    %789 = vmatpush.msra.mxu0 %v696
    %790 = vmatpush.msra.mxu0 %v695
    %791 = vmatmul.f32.gmra.mxu0 %v646
    %v792 = vpop.f32.mrf.mxu0
    %v793 = vadd.f32 %v773, %v792
    %794 = vdwg.mxu0
    %795 = vst [vmem:[#allocation14] sm:$0xff] %v793
    // Predicated region
    $region66: #{tpu_custom_call.1} parent=1 // pred_check
      _
    $region67: #{tpu_custom_call.1} parent=1 // pred_check_branch
      %797 = sbr.rel (0) target = $region69
    $region68: #{tpu_custom_call.1} parent=1 // pred_region
      %799 = vsyncadd [#allocation4], 0
      %s801 = sshll.u32 [#allocation14], 4
      %s802 = int_to_ptr.vmem [resolvable:$true] %s801
      %s803 = sshll.u32 %s9, 4
      %s804 = int_to_ptr.hbm [resolvable:$true] %s803
      %806 = dma.vmem_to_hbm [thread:$0]  %s802, 128, %s804, [#allocation4]
    $region69: #{tpu_custom_call.1} parent=1 // pred_fallthru
      _
    // Predicated region
    $region70: #{tpu_custom_call.1} parent=1 // pred_check
      _
    $region71: #{tpu_custom_call.1} parent=1 // pred_check_branch
      %808 = sbr.rel (0) target = $region73
    $region72: #{tpu_custom_call.1} parent=1 // pred_region
      %810 = dma.done [#allocation4], 128
    $region73: #{tpu_custom_call.1} parent=1 // pred_fallthru
      _
    %811 = vsyncpa [#allocation3], 1
    %812 = vsyncpa [#allocation6], 1
    %813 = vsyncpa [#allocation9], 1
    %814 = vsyncpa [#allocation12], 1
    %815 = vsyncpa [#allocation4], 1

</llo_original>
